<compile_context>
chip_gen: v5e
topology: v5e:2x2
jax: 0.10.0
libtpu: 0.0.40
codegen_flags: <defaults>
</compile_context>

<pallas_src>
import functools

import jax
import jax.numpy as jnp
from jax.experimental import pallas as pl
from jax.experimental.pallas import tpu as pltpu
import numpy as np


def _fraction_proposal_kernel(x_ref, w_ref, b_ref, tri_ref,
                              cums_ref, tau_hats_ref, ent_ref):
    # x: (Bblk, D) f32, w: (D, N) bf16, b: (1, N) f32, tri: (N, N) f32
    x = x_ref[...].astype(jnp.bfloat16)          # cheap VPU cast -> bf16 MXU matmul
    w = w_ref[...]

    # Linear layer: bf16 operands, f32 accumulation.
    logits = jnp.dot(x, w, preferred_element_type=jnp.float32) + b_ref[...]  # (Bblk, N)

    # Numerically stable log_softmax along dim=1 (all f32).
    m = jnp.max(logits, axis=-1, keepdims=True)
    shifted = logits - m
    lse = jnp.log(jnp.sum(jnp.exp(shifted), axis=-1, keepdims=True))
    log_probs = shifted - lse
    probs = jnp.exp(log_probs)                                               # (Bblk, N)

    # cumsum along dim=1 via a small hoisted upper-triangular matmul:
    # cums[:, i] = sum_{j <= i} probs[:, j]
    cums = jnp.dot(probs, tri_ref[...], preferred_element_type=jnp.float32)  # (Bblk, N)
    cums_ref[...] = cums.astype(cums_ref.dtype)

    # tau_hats[:, i] = (taus[:, i] + taus[:, i+1]) / 2 = cums[:, i] - probs[:, i] / 2
    tau_hats_ref[...] = (cums - 0.5 * probs).astype(tau_hats_ref.dtype)

    # entropies = -(log_probs * probs).sum(-1, keepdim=True)
    ent_ref[...] = (-jnp.sum(log_probs * probs, axis=-1, keepdims=True)).astype(ent_ref.dtype)


def prepare_params(weight, bias):
    """One-time (init-time) parameter prep.

    weight: (N, D) float32 in PyTorch Linear layout.
    Returns weight transposed to (D, N) in bf16, bias as (1, N) f32, and the
    constant (N, N) upper-triangular cumsum matrix.
    """
    n = weight.shape[0]
    w_dn = jnp.asarray(weight).T.astype(jnp.bfloat16)                 # (D, N) bf16
    b_2d = jnp.asarray(bias, dtype=jnp.float32).reshape(1, n)          # (1, N) f32
    tri = jnp.asarray(np.triu(np.ones((n, n), dtype=np.float32)))      # tri[j, i] = (j <= i)
    return w_dn, b_2d, tri


@functools.partial(jax.jit, static_argnames=("block_b",))
def fraction_proposal_forward(x, w_dn, b_2d, tri, *, block_b=None):
    """x: (B, D) float32; w_dn: (D, N) bf16; b_2d: (1, N) f32; tri: (N, N) f32."""
    B, D = x.shape
    N = w_dn.shape[1]
    if block_b is None:
        block_b = B if B <= 512 else 512
    grid = (pl.cdiv(B, block_b),)

    cums, tau_hats, entropies = pl.pallas_call(
        _fraction_proposal_kernel,
        out_shape=(
            jax.ShapeDtypeStruct((B, N), x.dtype),    # cumsum(probs)
            jax.ShapeDtypeStruct((B, N), x.dtype),    # tau_hats
            jax.ShapeDtypeStruct((B, 1), x.dtype),    # entropies
        ),
        grid=grid,
        in_specs=[
            pl.BlockSpec((block_b, D), lambda i: (i, 0)),
            pl.BlockSpec((D, N), lambda i: (0, 0)),   # weight stays resident
            pl.BlockSpec((1, N), lambda i: (0, 0)),
            pl.BlockSpec((N, N), lambda i: (0, 0)),
        ],
        out_specs=(
            pl.BlockSpec((block_b, N), lambda i: (i, 0)),
            pl.BlockSpec((block_b, N), lambda i: (i, 0)),
            pl.BlockSpec((block_b, 1), lambda i: (i, 0)),
        ),
        compiler_params=pltpu.CompilerParams(dimension_semantics=("parallel",)),
    )(x, w_dn, b_2d, tri)

    # taus = concat(zeros(B,1), cums): assembled outside the kernel so the kernel
    # writes clean lane-dense (B, N) blocks instead of an odd 33-lane output.
    taus = jnp.concatenate([jnp.zeros((B, 1), dtype=cums.dtype), cums], axis=1)
    return taus, tau_hats, entropies


def _reference_forward(x, weight_nd, bias):
    # Same bf16-operand / f32-accumulate matmul as the kernel, rest in f32.
    logits = jnp.dot(x.astype(jnp.bfloat16), weight_nd.T.astype(jnp.bfloat16),
                     preferred_element_type=jnp.float32) + bias
    log_probs = jax.nn.log_softmax(logits, axis=1)
    probs = jnp.exp(log_probs)
    tau_0 = jnp.zeros((x.shape[0], 1), dtype=x.dtype)
    taus = jnp.concatenate([tau_0, jnp.cumsum(probs, axis=1)], axis=1)
    tau_hats = (taus[:, :-1] + taus[:, 1:]) / 2.0
    entropies = -jnp.sum(log_probs * probs, axis=-1, keepdims=True)
    return taus, tau_hats, entropies


if __name__ == "__main__":
    N = 32
    embedding_dim = 256   # small-shape demo (module default is 7*7*64)
    batch = 8

    key = jax.random.PRNGKey(0)
    kx, kw = jax.random.split(key)

    # Xavier-uniform init with gain=0.01 (deterministic), bias = 0.
    gain = 0.01
    bound = gain * np.sqrt(6.0 / (embedding_dim + N))
    weight = jax.random.uniform(kw, (N, embedding_dim), dtype=jnp.float32,
                                minval=-bound, maxval=bound)       # PyTorch (N, D) layout
    bias = jnp.zeros((N,), dtype=jnp.float32)

    x = jax.random.normal(kx, (batch, embedding_dim), dtype=jnp.float32)

    # One-time parameter prep (outside the hot path / jit).
    w_dn, b_2d, tri = prepare_params(weight, bias)

    taus, tau_hats, entropies = jax.block_until_ready(
        fraction_proposal_forward(x, w_dn, b_2d, tri))

    # Sanity check against a plain-JAX reference (same bf16 matmul numerics).
    r_taus, r_tau_hats, r_ent = _reference_forward(x, weight, bias)
    assert taus.shape == (batch, N + 1)
    assert tau_hats.shape == (batch, N)
    assert entropies.shape == (batch, 1)
    np.testing.assert_allclose(np.asarray(taus), np.asarray(r_taus),
                               rtol=1e-4, atol=1e-5)
    np.testing.assert_allclose(np.asarray(tau_hats), np.asarray(r_tau_hats),
                               rtol=1e-4, atol=1e-5)
    np.testing.assert_allclose(np.asarray(entropies), np.asarray(r_ent),
                               rtol=1e-4, atol=1e-5)

    print("KERNEL_OK")
</pallas_src>

<mosaic_0001>
module attributes {stable_mosaic.version = 11 : i64} {
  func.func @_fraction_proposal_kernel(%arg0: i32, %arg1: memref<8x256xf32, #tpu.memory_space<vmem>>, %arg2: memref<256x32xbf16, #tpu.memory_space<vmem>>, %arg3: memref<1x32xf32, #tpu.memory_space<vmem>>, %arg4: memref<32x32xf32, #tpu.memory_space<vmem>>, %arg5: memref<8x32xf32, #tpu.memory_space<vmem>>, %arg6: memref<8x32xf32, #tpu.memory_space<vmem>>, %arg7: memref<8x1xf32, #tpu.memory_space<vmem>>) attributes {dimension_semantics = [#tpu.dimension_semantics<parallel>], iteration_bounds = array<i64: 1>, scalar_prefetch = 0 : i64, scratch_operands = 0 : i64, tpu.core_type = #tpu.core_type<tc>, window_params = [{transform_indices = @transform_0, window_bounds = array<i64: 8, 256>}, {pipeline_mode = #tpu.pipeline_mode<synchronous>, transform_indices = @transform_1, window_bounds = array<i64: 256, 32>}, {pipeline_mode = #tpu.pipeline_mode<synchronous>, transform_indices = @transform_2, window_bounds = array<i64: 1, 32>}, {pipeline_mode = #tpu.pipeline_mode<synchronous>, transform_indices = @transform_3, window_bounds = array<i64: 32, 32>}, {transform_indices = @transform_4, window_bounds = array<i64: 8, 32>}, {transform_indices = @transform_5, window_bounds = array<i64: 8, 32>}, {transform_indices = @transform_6, window_bounds = array<i64: 8, 1>}]} {
    %c0 = arith.constant 0 : index
    %c0_0 = arith.constant 0 : index
    %0 = vector.load %arg1[%c0, %c0_0] : memref<8x256xf32, #tpu.memory_space<vmem>>, vector<8x256xf32>
    %1 = arith.truncf %0 : vector<8x256xf32> to vector<8x256xbf16>
    %c0_1 = arith.constant 0 : index
    %c0_2 = arith.constant 0 : index
    %2 = vector.load %arg2[%c0_1, %c0_2] : memref<256x32xbf16, #tpu.memory_space<vmem>>, vector<256x32xbf16>
    %cst = arith.constant dense<0.000000e+00> : vector<8x32xf32>
    %3 = tpu.matmul %1, %2, %cst {dimension_numbers = #tpu.dot_dimension_numbers<[1], [0], [0], [1], [0, 0, 1, 1], [], []>} : vector<8x256xbf16>, vector<256x32xbf16>, vector<8x32xf32> -> vector<8x32xf32>
    %c0_3 = arith.constant 0 : index
    %c0_4 = arith.constant 0 : index
    %4 = vector.load %arg3[%c0_3, %c0_4] : memref<1x32xf32, #tpu.memory_space<vmem>>, vector<1x32xf32>
    %5 = vector.broadcast %4 : vector<1x32xf32> to vector<8x32xf32>
    %6 = arith.addf %3, %5 : vector<8x32xf32>
    %cst_5 = arith.constant dense<0xFF800000> : vector<8xf32>
    %7 = vector.multi_reduction <maximumf>, %6, %cst_5 [1] : vector<8x32xf32> to vector<8xf32>
    %8 = vector.shape_cast %7 : vector<8xf32> to vector<8x1xf32>
    %9 = vector.broadcast %8 : vector<8x1xf32> to vector<8x32xf32>
    %10 = arith.subf %6, %9 : vector<8x32xf32>
    %11 = math.exp %10 : vector<8x32xf32>
    %cst_6 = arith.constant dense<0.000000e+00> : vector<8xf32>
    %12 = vector.multi_reduction <add>, %11, %cst_6 [1] : vector<8x32xf32> to vector<8xf32>
    %13 = vector.shape_cast %12 : vector<8xf32> to vector<8x1xf32>
    %14 = math.log %13 : vector<8x1xf32>
    %15 = vector.broadcast %14 : vector<8x1xf32> to vector<8x32xf32>
    %16 = arith.subf %10, %15 : vector<8x32xf32>
    %17 = math.exp %16 : vector<8x32xf32>
    %c0_7 = arith.constant 0 : index
    %c0_8 = arith.constant 0 : index
    %18 = vector.load %arg4[%c0_7, %c0_8] : memref<32x32xf32, #tpu.memory_space<vmem>>, vector<32x32xf32>
    %cst_9 = arith.constant dense<0.000000e+00> : vector<8x32xf32>
    %19 = tpu.matmul %17, %18, %cst_9 {dimension_numbers = #tpu.dot_dimension_numbers<[1], [0], [0], [1], [0, 0, 1, 1], [], []>} : vector<8x32xf32>, vector<32x32xf32>, vector<8x32xf32> -> vector<8x32xf32>
    %c0_10 = arith.constant 0 : index
    %c0_11 = arith.constant 0 : index
    %20 = vector.load %arg5[%c0_10, %c0_11] : memref<8x32xf32, #tpu.memory_space<vmem>>, vector<8x32xf32>
    tpu.vector_store %arg5[%c0_10, %c0_11], %19 {strides = array<i32>} : memref<8x32xf32, #tpu.memory_space<vmem>>, vector<8x32xf32>,
    %cst_12 = arith.constant 5.000000e-01 : f32
    %21 = vector.broadcast %cst_12 : f32 to vector<8x32xf32>
    %22 = arith.mulf %21, %17 : vector<8x32xf32>
    %23 = arith.subf %19, %22 : vector<8x32xf32>
    %c0_13 = arith.constant 0 : index
    %c0_14 = arith.constant 0 : index
    %24 = vector.load %arg6[%c0_13, %c0_14] : memref<8x32xf32, #tpu.memory_space<vmem>>, vector<8x32xf32>
    tpu.vector_store %arg6[%c0_13, %c0_14], %23 {strides = array<i32>} : memref<8x32xf32, #tpu.memory_space<vmem>>, vector<8x32xf32>,
    %25 = arith.mulf %16, %17 : vector<8x32xf32>
    %cst_15 = arith.constant dense<0.000000e+00> : vector<8xf32>
    %26 = vector.multi_reduction <add>, %25, %cst_15 [1] : vector<8x32xf32> to vector<8xf32>
    %27 = vector.shape_cast %26 : vector<8xf32> to vector<8x1xf32>
    %cst_16 = arith.constant 0.000000e+00 : f32
    %28 = vector.broadcast %cst_16 : f32 to vector<8x1xf32>
    %29 = arith.subf %28, %27 : vector<8x1xf32>
    %c0_17 = arith.constant 0 : index
    %c0_18 = arith.constant 0 : index
    %30 = vector.load %arg7[%c0_17, %c0_18] : memref<8x1xf32, #tpu.memory_space<vmem>>, vector<8x1xf32>
    tpu.vector_store %arg7[%c0_17, %c0_18], %29 {strides = array<i32>} : memref<8x1xf32, #tpu.memory_space<vmem>>, vector<8x1xf32>,
    return
  }
  func.func @transform_0(%arg0: i32) -> (i32, i32) {
    %c0_i32 = arith.constant 0 : i32
    %c0_i32_0 = arith.constant 0 : i32
    return %arg0, %c0_i32 : i32, i32
  }
  func.func @transform_1(%arg0: i32) -> (i32, i32) {
    %c0_i32 = arith.constant 0 : i32
    %c0_i32_0 = arith.constant 0 : i32
    %c0_i32_1 = arith.constant 0 : i32
    return %c0_i32, %c0_i32_0 : i32, i32
  }
  func.func @transform_2(%arg0: i32) -> (i32, i32) {
    %c0_i32 = arith.constant 0 : i32
    %c0_i32_0 = arith.constant 0 : i32
    %c0_i32_1 = arith.constant 0 : i32
    return %c0_i32, %c0_i32_0 : i32, i32
  }
  func.func @transform_3(%arg0: i32) -> (i32, i32) {
    %c0_i32 = arith.constant 0 : i32
    %c0_i32_0 = arith.constant 0 : i32
    %c0_i32_1 = arith.constant 0 : i32
    return %c0_i32, %c0_i32_0 : i32, i32
  }
  func.func @transform_4(%arg0: i32) -> (i32, i32) {
    %c0_i32 = arith.constant 0 : i32
    %c0_i32_0 = arith.constant 0 : i32
    return %arg0, %c0_i32 : i32, i32
  }
  func.func @transform_5(%arg0: i32) -> (i32, i32) {
    %c0_i32 = arith.constant 0 : i32
    %c0_i32_0 = arith.constant 0 : i32
    return %arg0, %c0_i32 : i32, i32
  }
  func.func @transform_6(%arg0: i32) -> (i32, i32) {
    %c0_i32 = arith.constant 0 : i32
    %c0_i32_0 = arith.constant 0 : i32
    return %arg0, %c0_i32 : i32, i32
  }
}

</mosaic_0001>

<llo_original>
// kernel: fraction_proposal_forward.1
$region0: #{fraction_proposal_forward.1}
  #allocation0 [shape = 'u32[]', space=smem, size = 0x4, offset = 0x4, fixed_abs, tag = 'smem constant byte address 0x4 - core index']
  #allocation1 [shape = 'u32[72,128]{1,0:T(1,128)}', space=vmem, size = 0x9000, scoped, tag = 'internal scratch']
  %s0 = inlined_call_operand.vmem [shape: f32[8,256], index: 0, kind: input, shape index: {}]
  %s1 = inlined_call_operand.vmem [shape: bf16[256,32], index: 1, kind: input, shape index: {}]
  %s2 = inlined_call_operand.vmem [shape: f32[1,32], index: 2, kind: input, shape index: {}]
  %s3 = inlined_call_operand.vmem [shape: f32[32,32], index: 3, kind: input, shape index: {}]
  %s4 = inlined_call_operand.vmem [shape: f32[8,32], index: 4, kind: output, shape index: {0}]
  %s5 = inlined_call_operand.hbm [shape: f32[8,32], index: 5, kind: output, shape index: {1}]
  %s6 = inlined_call_operand.vmem [shape: f32[8,1], index: 6, kind: output, shape index: {2}]
  %7 = xla_tuple %s4, %s5, %s6
  %s8 = sld [smem:[#allocation0]]
  $region42: #{fraction_proposal_forward.1} parent=0
    _
  %s10 = ssub.s32 1, %s8
  %s11 = scalar_select 0, %s10, %s8
  $region1: #{fraction_proposal_forward.1} parent=0
    #allocation2 [shape = 'u8[4096]{0}', space=vmem, size = 0x1000, scoped, tag = 'output window, operand 1, single buffered']
    #allocation3 [shape = 's32[1]{0}', space=sflag, size = 0x4, scoped, tag = 'scoped memory for fraction_proposal_forward.1']
    %12 = vsyncpa [#allocation3], 0
    // Predicated region
    $region2: #{fraction_proposal_forward.1} parent=1 // pred_check
      _
    $region3: #{fraction_proposal_forward.1} parent=1 // pred_check_branch
      %14 = sbr.rel (0) target = $region5
    $region4: #{fraction_proposal_forward.1} parent=1 // pred_region
      _
    $region5: #{fraction_proposal_forward.1} parent=1 // pred_fallthru
      _
    // Predicated region
    $region6: #{fraction_proposal_forward.1} parent=1 // pred_check
      _
    $region7: #{fraction_proposal_forward.1} parent=1 // pred_check_branch
      %16 = sbr.rel (0) target = $region9
    $region8: #{fraction_proposal_forward.1} parent=1 // pred_region
      _
    $region9: #{fraction_proposal_forward.1} parent=1 // pred_fallthru
      _
    // Predicated region
    $region10: #{fraction_proposal_forward.1} parent=1 // pred_check
      _
    $region11: #{fraction_proposal_forward.1} parent=1 // pred_check_branch
      %18 = sbr.rel (0) target = $region13
    $region12: #{fraction_proposal_forward.1} parent=1 // pred_region
      _
    $region13: #{fraction_proposal_forward.1} parent=1 // pred_fallthru
      _
    // Predicated region
    $region14: #{fraction_proposal_forward.1} parent=1 // pred_check
      _
    $region15: #{fraction_proposal_forward.1} parent=1 // pred_check_branch
      %20 = sbr.rel (0) target = $region17
    $region16: #{fraction_proposal_forward.1} parent=1 // pred_region
      _
    $region17: #{fraction_proposal_forward.1} parent=1 // pred_fallthru
      _
    %v21 = vld [vmem:[%s0] sm:$0xff]
    %v22 = vld [vmem:[%s0 + $0x8] sm:$0xff]
    %v23 = vpack.c.bf16 %v21, %v21
    %v24 = vpack.c.bf16 %v22, %v22
    %v25 = vld [vmem:[%s1] sm:$0xf]
    %v26 = vld [vmem:[%s1 + $0x4] sm:$0xf]
    %v27 = vld [vmem:[%s1 + $0x8] sm:$0xf]
    %v28 = vld [vmem:[%s1 + $0xc] sm:$0xf]
    %v29 = vld [vmem:[%s1 + $0x10] sm:$0xf]
    %v30 = vld [vmem:[%s1 + $0x14] sm:$0xf]
    %v31 = vld [vmem:[%s1 + $0x18] sm:$0xf]
    %v32 = vld [vmem:[%s1 + $0x1c] sm:$0xf]
    %v33 = vld [vmem:[%s1 + $0x20] sm:$0xf]
    %v34 = vld [vmem:[%s1 + $0x24] sm:$0xf]
    %v35 = vld [vmem:[%s1 + $0x28] sm:$0xf]
    %v36 = vld [vmem:[%s1 + $0x2c] sm:$0xf]
    %v37 = vld [vmem:[%s1 + $0x30] sm:$0xf]
    %v38 = vld [vmem:[%s1 + $0x34] sm:$0xf]
    %v39 = vld [vmem:[%s1 + $0x38] sm:$0xf]
    %v40 = vld [vmem:[%s1 + $0x3c] sm:$0xf]
    %v41 = vld [vmem:[%s1 + $0x40] sm:$0xf]
    %v42 = vld [vmem:[%s1 + $0x44] sm:$0xf]
    %v43 = vld [vmem:[%s1 + $0x48] sm:$0xf]
    %v44 = vld [vmem:[%s1 + $0x4c] sm:$0xf]
    %v45 = vld [vmem:[%s1 + $0x50] sm:$0xf]
    %v46 = vld [vmem:[%s1 + $0x54] sm:$0xf]
    %v47 = vld [vmem:[%s1 + $0x58] sm:$0xf]
    %v48 = vld [vmem:[%s1 + $0x5c] sm:$0xf]
    %v49 = vld [vmem:[%s1 + $0x60] sm:$0xf]
    %v50 = vld [vmem:[%s1 + $0x64] sm:$0xf]
    %v51 = vld [vmem:[%s1 + $0x68] sm:$0xf]
    %v52 = vld [vmem:[%s1 + $0x6c] sm:$0xf]
    %v53 = vld [vmem:[%s1 + $0x70] sm:$0xf]
    %v54 = vld [vmem:[%s1 + $0x74] sm:$0xf]
    %v55 = vld [vmem:[%s1 + $0x78] sm:$0xf]
    %v56 = vld [vmem:[%s1 + $0x7c] sm:$0xf]
    %v57 = vld [vmem:[%s2] sm:$0x1]
    %v59 = vperm.slane %v57, 0
    %v93 = vunpack.c.l.b16 %v25
    %v94 = vunpack.c.l.b16 %v26
    %v95 = vunpack.c.l.b16 %v27
    %v96 = vunpack.c.l.b16 %v28
    %v97 = vunpack.c.l.b16 %v29
    %v98 = vunpack.c.l.b16 %v30
    %v99 = vunpack.c.l.b16 %v31
    %v100 = vunpack.c.l.b16 %v32
    %v101 = vunpack.c.l.b16 %v33
    %v102 = vunpack.c.l.b16 %v34
    %v103 = vunpack.c.l.b16 %v35
    %v104 = vunpack.c.l.b16 %v36
    %v105 = vunpack.c.l.b16 %v37
    %v106 = vunpack.c.l.b16 %v38
    %v107 = vunpack.c.l.b16 %v39
    %v108 = vunpack.c.l.b16 %v40
    %v109 = vunpack.c.l.b16 %v41
    %v110 = vunpack.c.l.b16 %v42
    %v111 = vunpack.c.l.b16 %v43
    %v112 = vunpack.c.l.b16 %v44
    %v113 = vunpack.c.l.b16 %v45
    %v114 = vunpack.c.l.b16 %v46
    %v115 = vunpack.c.l.b16 %v47
    %v116 = vunpack.c.l.b16 %v48
    %v117 = vunpack.c.l.b16 %v49
    %v118 = vunpack.c.l.b16 %v50
    %v119 = vunpack.c.l.b16 %v51
    %v120 = vunpack.c.l.b16 %v52
    %v121 = vunpack.c.l.b16 %v53
    %v122 = vunpack.c.l.b16 %v54
    %v123 = vunpack.c.l.b16 %v55
    %v124 = vunpack.c.l.b16 %v56
    %v125 = vpack.c.b16 %v94, %v93
    %v126 = vpack.c.b16 %v96, %v95
    %v127 = vpack.c.b16 %v98, %v97
    %v128 = vpack.c.b16 %v100, %v99
    %v129 = vpack.c.b16 %v102, %v101
    %v130 = vpack.c.b16 %v104, %v103
    %v131 = vpack.c.b16 %v106, %v105
    %v132 = vpack.c.b16 %v108, %v107
    %v133 = vpack.c.b16 %v110, %v109
    %v134 = vpack.c.b16 %v112, %v111
    %v135 = vpack.c.b16 %v114, %v113
    %v136 = vpack.c.b16 %v116, %v115
    %v137 = vpack.c.b16 %v118, %v117
    %v138 = vpack.c.b16 %v120, %v119
    %v139 = vpack.c.b16 %v122, %v121
    %v140 = vpack.c.b16 %v124, %v123
    %157 = vmatpush.bf16.msra.mxu0 %v132
    %158 = vmatpush.bf16.msra.mxu0 %v131
    %159 = vmatpush.bf16.msra.mxu0 %v130
    %160 = vmatpush.bf16.msra.mxu0 %v129
    %161 = vmatpush.bf16.msra.mxu0 %v128
    %162 = vmatpush.bf16.msra.mxu0 %v127
    %163 = vmatpush.bf16.msra.mxu0 %v126
    %164 = vmatpush.bf16.msra.mxu0 %v125
    %165 = vmatmul.bf16.gmra.mxu0 %v23
    %v166 = vpop.f32.mrf.mxu0
    %v167 = vadd.f32 %v59, %v166
    %v168 = vpop.f32.mrf.mxu0
    %169 = vdwg.mxu0
    %170 = vmatpush.bf16.msra.mxu0 %v140
    %171 = vmatpush.bf16.msra.mxu0 %v139
    %172 = vmatpush.bf16.msra.mxu0 %v138
    %173 = vmatpush.bf16.msra.mxu0 %v137
    %174 = vmatpush.bf16.msra.mxu0 %v136
    %175 = vmatpush.bf16.msra.mxu0 %v135
    %176 = vmatpush.bf16.msra.mxu0 %v134
    %177 = vmatpush.bf16.msra.mxu0 %v133
    %178 = vmatmul.bf16.gmra.mxu0 %v24
    %v179 = vpop.f32.mrf.mxu0
    %v180 = vadd.f32 %v167, %v179
    %v181 = vpop.f32.mrf.mxu0
    %182 = vdwg.mxu0
    %vm183 = vcmask 261120
    %v184 = vsel %vm183, %v180, -inf
    %185 = vmax.xlane.f32.xlu0 %v184
    %v186 = vpop.xlane.xlu0 %185
    %v187 = vsub.f32 %v180, %v186
    %v188 = vmul.f32 %v187, 1.442695
    %v189 = vpow.pop %v188
    %v190 = vsel %vm183, %v189, 0.0
    %191 = vadd.xlane.f32.xlu0 %v190
    %v192 = vpop.xlane.xlu0 %191
    %v193 = vlog2.pop %v192
    %v194 = vmul.f32 %v193, 0.6931472
    %v195 = vsub.f32 %v187, %v194
    %v196 = vmul.f32 %v195, 1.442695
    %v197 = vpow.pop %v196
    %v198 = vld [vmem:[%s3] sm:$0xff]
    %v199 = vld [vmem:[%s3 + $0x8] sm:$0xff]
    %v200 = vld [vmem:[%s3 + $0x10] sm:$0xff]
    %v201 = vld [vmem:[%s3 + $0x18] sm:$0xff]
    %v203 = vsel %vm183, %v197, 0
    %205 = vmatpush.msra.mxu0 0.0
    %206 = vmatpush.msra.mxu0 0.0
    %207 = vmatpush.msra.mxu0 0.0
    %208 = vmatpush.msra.mxu0 0.0
    %209 = vmatpush.msra.mxu0 0.0
    %210 = vmatpush.msra.mxu0 0.0
    %211 = vmatpush.msra.mxu0 0.0
    %212 = vmatpush.msra.mxu0 0.0
    %213 = vmatpush.msra.mxu0 0.0
    %214 = vmatpush.msra.mxu0 0.0
    %215 = vmatpush.msra.mxu0 0.0
    %216 = vmatpush.msra.mxu0 0.0
    %217 = vmatpush.msra.mxu0 %v201
    %218 = vmatpush.msra.mxu0 %v200
    %219 = vmatpush.msra.mxu0 %v199
    %220 = vmatpush.msra.mxu0 %v198
    %221 = vmatmul.f32.gmra.mxu0 %v203
    %v222 = vpop.f32.mrf.mxu0
    %v223 = vadd.f32 0.0, %v222
    %224 = vdwg.mxu0
    %225 = vst.msk [vmem:[%s4] sm:$0xff] %vm183, %v223
    %v226 = vmul.f32 %v197, 0.5
    %v227 = vsub.f32 %v223, %v226
    %228 = vst.msk [vmem:[#allocation2] sm:$0xff] %vm183, %v227
    %v229 = vmul.f32 %v195, %v197
    %v230 = vsel %vm183, %v229, 0.0
    %231 = vadd.xlane.f32.xlu0 %v230
    %v232 = vpop.xlane.xlu0 %231
    %v233 = vsub.f32 0.0, %v232
    %vm234 = vcmask 7168
    %235 = vst.msk [vmem:[%s6] sm:$0xff] %vm234, %v233
    // Predicated region
    $region18: #{fraction_proposal_forward.1} parent=1 // pred_check
      _
    $region19: #{fraction_proposal_forward.1} parent=1 // pred_check_branch
      %237 = sbr.rel (0) target = $region21
    $region20: #{fraction_proposal_forward.1} parent=1 // pred_region
      _
    $region21: #{fraction_proposal_forward.1} parent=1 // pred_fallthru
      _
    // Predicated region
    $region22: #{fraction_proposal_forward.1} parent=1 // pred_check
      _
    $region23: #{fraction_proposal_forward.1} parent=1 // pred_check_branch
      %239 = sbr.rel (0) target = $region25
    $region24: #{fraction_proposal_forward.1} parent=1 // pred_region
      %241 = vsyncadd [#allocation3], 0
      %s243 = sshll.u32 [#allocation2], 4
      %s244 = int_to_ptr.vmem [resolvable:$true] %s243
      %s245 = sshll.u32 %s5, 4
      %s246 = int_to_ptr.hbm [resolvable:$true] %s245
      %248 = dma.vmem_to_hbm [thread:$0]  %s244, 128, %s246, [#allocation3]
    $region25: #{fraction_proposal_forward.1} parent=1 // pred_fallthru
      _
    // Predicated region
    $region26: #{fraction_proposal_forward.1} parent=1 // pred_check
      _
    $region27: #{fraction_proposal_forward.1} parent=1 // pred_check_branch
      %250 = sbr.rel (0) target = $region29
    $region28: #{fraction_proposal_forward.1} parent=1 // pred_region
      _
    $region29: #{fraction_proposal_forward.1} parent=1 // pred_fallthru
      _
    // Predicated region
    $region30: #{fraction_proposal_forward.1} parent=1 // pred_check
      _
    $region31: #{fraction_proposal_forward.1} parent=1 // pred_check_branch
      %252 = sbr.rel (0) target = $region33
    $region32: #{fraction_proposal_forward.1} parent=1 // pred_region
      _
    $region33: #{fraction_proposal_forward.1} parent=1 // pred_fallthru
      _
    // Predicated region
    $region34: #{fraction_proposal_forward.1} parent=1 // pred_check
      _
    $region35: #{fraction_proposal_forward.1} parent=1 // pred_check_branch
      %254 = sbr.rel (0) target = $region37
    $region36: #{fraction_proposal_forward.1} parent=1 // pred_region
      %256 = dma.done [#allocation3], 128
    $region37: #{fraction_proposal_forward.1} parent=1 // pred_fallthru
      _
    // Predicated region
    $region38: #{fraction_proposal_forward.1} parent=1 // pred_check
      _
    $region39: #{fraction_proposal_forward.1} parent=1 // pred_check_branch
      %258 = sbr.rel (0) target = $region41
    $region40: #{fraction_proposal_forward.1} parent=1 // pred_region
      _
    $region41: #{fraction_proposal_forward.1} parent=1 // pred_fallthru
      _
    %259 = vsyncpa [#allocation3], 1

</llo_original>
